<compile_context>
chip_gen: v7x
topology: tpu7x:2x2x1
jax: 0.10.0
libtpu: 0.0.40
codegen_flags: <defaults>
</compile_context>

<pallas_src>
import jax
import jax.numpy as jnp
from jax.experimental import pallas as pl
from jax.experimental.pallas import tpu as pltpu


def _normalize_kernel(sb_ref, img_ref, out_ref):
    # img_ref/out_ref: (R, T) lane-dense tile.
    # sb_ref: (R, 2) f32; column 0 = scale (1/std), column 1 = bias (-mean/std).
    x = img_ref[...].astype(jnp.float32)
    scale = sb_ref[:, 0:1]
    bias = sb_ref[:, 1:2]
    out_ref[...] = (x * scale + bias).astype(out_ref.dtype)


def _round_up(x, m):
    return ((x + m - 1) // m) * m


def normalization_forward(img, mean, std):
    """img: (N, C, H, W); mean, std: (C,) per-channel arrays."""
    N, C, H, W = img.shape
    NC, HW = N * C, H * W
    itemsize = jnp.dtype(img.dtype).itemsize

    # Lane-dense flattened view: row = n*C + c, columns = H*W spatial elems.
    img2d = img.reshape(NC, HW)

    # Exact f32 precompute:  out = img * (1/std) + (-mean/std)
    # (~1 ulp off the reference (img - mean)/std; std == 0 -> inf/nan, matching
    #  PyTorch semantics.)
    mean_f32 = mean.astype(jnp.float32)
    std_f32 = std.astype(jnp.float32)
    scale_c = 1.0 / std_f32
    bias_c = -mean_f32 / std_f32
    sb = jnp.stack([jnp.tile(scale_c, N), jnp.tile(bias_c, N)], axis=-1)  # (NC, 2)

    # ---- Tile sizing -------------------------------------------------------
    lane_align = 128
    # Sub-32-bit dtypes pack along sublanes: keep R a multiple of the packed
    # sublane extent so output stores stay unmasked.
    sublane_align = max(8, 32 // itemsize)

    # Lane tile: up to 8192 elements (big contiguous DMA bursts).
    T = min(_round_up(HW, lane_align), 8192)

    # Row tile: fill an ~8 MiB block (4x live when double-buffered in + out
    # => ~32 MiB, safe on every generation including v7x's 64 MiB VMEM).
    block_budget = 8 * 1024 * 1024
    max_rows = max(sublane_align, block_budget // (T * itemsize))
    max_rows = max(sublane_align, (max_rows // sublane_align) * sublane_align)
    R = min(_round_up(NC, sublane_align), max_rows)

    # cdiv grid with masked ragged edges: correct for this elementwise op and
    # keeps near-optimal tiles for any shape.
    grid = (pl.cdiv(NC, R), pl.cdiv(HW, T))

    out2d = pl.pallas_call(
        _normalize_kernel,
        out_shape=jax.ShapeDtypeStruct((NC, HW), img.dtype),
        grid_spec=pltpu.PrefetchScalarGridSpec(
            num_scalar_prefetch=0,
            grid=grid,
            in_specs=[
                # packed per-row (scale, bias); re-DMA'd only when the row-tile
                # changes (single small descriptor instead of two).
                pl.BlockSpec((R, 2), lambda i, j: (i, 0)),
                # lane-dense image tile
                pl.BlockSpec((R, T), lambda i, j: (i, j)),
            ],
            out_specs=pl.BlockSpec((R, T), lambda i, j: (i, j)),
        ),
        compiler_params=pltpu.CompilerParams(
            # Row axis sharded across TCs (v7x); spatial tiles walked
            # sequentially per core for a contiguous HBM address stream.
            dimension_semantics=("parallel", "arbitrary"),
            vmem_limit_bytes=48 * 1024 * 1024,
        ),
        cost_estimate=pl.CostEstimate(
            flops=2 * img.size,
            transcendentals=0,
            bytes_accessed=2 * img.size * itemsize,
        ),
    )(sb, img2d)

    return out2d.reshape(N, C, H, W)


if __name__ == "__main__":
    key = jax.random.PRNGKey(0)
    N, C, H, W = 2, 4, 16, 16

    img = jax.random.uniform(key, (N, C, H, W), dtype=jnp.float32)

    # Deterministic per-channel normalization constants (ImageNet-style,
    # extended to C channels).
    mean = jnp.array([0.485, 0.456, 0.406, 0.5], dtype=jnp.float32)[:C]
    std = jnp.array([0.229, 0.224, 0.225, 0.25], dtype=jnp.float32)[:C]

    out = normalization_forward(img, mean, std)
    out = jax.block_until_ready(out)

    # Reference: same broadcasting as PyTorch's view(-1, 1, 1).
    ref = (img - mean.reshape(1, C, 1, 1)) / std.reshape(1, C, 1, 1)
    assert out.shape == (N, C, H, W)
    assert jnp.allclose(out, ref, atol=1e-6, rtol=1e-6), float(
        jnp.max(jnp.abs(out - ref))
    )

    print("KERNEL_OK")
</pallas_src>

<mosaic_0001>
module attributes {stable_mosaic.version = 11 : i64} {
  func.func @_normalize_kernel(%arg0: i32, %arg1: i32, %arg2: memref<8x2xf32, #tpu.memory_space<vmem>>, %arg3: memref<8x256xf32, #tpu.memory_space<vmem>>, %arg4: memref<8x256xf32, #tpu.memory_space<vmem>>) attributes {dimension_semantics = [#tpu.dimension_semantics<parallel>, #tpu.dimension_semantics<arbitrary>], iteration_bounds = array<i64: 1, 1>, scalar_prefetch = 0 : i64, scratch_operands = 0 : i64, tpu.core_type = #tpu.core_type<tc>, window_params = [{transform_indices = @transform_0, window_bounds = array<i64: 8, 2>}, {transform_indices = @transform_1, window_bounds = array<i64: 8, 256>}, {transform_indices = @transform_2, window_bounds = array<i64: 8, 256>}]} {
    %c0 = arith.constant 0 : index
    %c0_0 = arith.constant 0 : index
    %0 = vector.load %arg3[%c0, %c0_0] : memref<8x256xf32, #tpu.memory_space<vmem>>, vector<8x256xf32>
    %c0_1 = arith.constant 0 : index
    %c0_2 = arith.constant 0 : index
    %1 = vector.load %arg2[%c0_1, %c0_2] : memref<8x2xf32, #tpu.memory_space<vmem>>, vector<8x1xf32>
    %c0_3 = arith.constant 0 : index
    %c1 = arith.constant 1 : index
    %2 = vector.load %arg2[%c0_3, %c1] : memref<8x2xf32, #tpu.memory_space<vmem>>, vector<8x1xf32>
    %3 = vector.broadcast %1 : vector<8x1xf32> to vector<8x256xf32>
    %4 = arith.mulf %0, %3 : vector<8x256xf32>
    %5 = vector.broadcast %2 : vector<8x1xf32> to vector<8x256xf32>
    %6 = arith.addf %4, %5 : vector<8x256xf32>
    %c0_4 = arith.constant 0 : index
    %c0_5 = arith.constant 0 : index
    %7 = vector.load %arg4[%c0_4, %c0_5] : memref<8x256xf32, #tpu.memory_space<vmem>>, vector<8x256xf32>
    tpu.vector_store %arg4[%c0_4, %c0_5], %6 {strides = array<i32>} : memref<8x256xf32, #tpu.memory_space<vmem>>, vector<8x256xf32>,
    return
  }
  func.func @transform_0(%arg0: i32, %arg1: i32) -> (i32, i32) {
    %c0_i32 = arith.constant 0 : i32
    %c0_i32_0 = arith.constant 0 : i32
    return %arg0, %c0_i32 : i32, i32
  }
  func.func @transform_1(%arg0: i32, %arg1: i32) -> (i32, i32) {
    %c0_i32 = arith.constant 0 : i32
    return %arg0, %arg1 : i32, i32
  }
  func.func @transform_2(%arg0: i32, %arg1: i32) -> (i32, i32) {
    %c0_i32 = arith.constant 0 : i32
    return %arg0, %arg1 : i32, i32
  }
}

</mosaic_0001>

<llo_original>
// kernel: tpu_custom_call.1
$region0: #{tpu_custom_call.1}
  #allocation0 [shape = 'u32[]', space=smem, size = 0x4, offset = 0x4, fixed_abs, tag = 'smem constant byte address 0x4 - core index']
  #allocation1 [shape = 'u32[144,128]{1,0:T(1,128)}', space=vmem, size = 0x12000, scoped, tag = 'internal scratch']
  %s0 = inlined_call_operand.vmem [shape: f32[8,2], index: 0, kind: input, shape index: {}]
  %s1 = inlined_call_operand.hbm [shape: f32[8,256], index: 1, kind: input, shape index: {}]
  %s2 = inlined_call_operand.hbm [shape: f32[8,256], index: 2, kind: output, shape index: {}]
  %s3 = sld [smem:[#allocation0]]
  $region22: #{tpu_custom_call.1} parent=0
    _
  %s5 = ssub.s32 1, %s3
  %s6 = scalar_select 0, %s5, %s3
  $region1: #{tpu_custom_call.1} parent=0
    #allocation2 [shape = 'u8[8192]{0}', space=vmem, size = 0x2000, scoped, tag = 'input window, operand 1, single buffered']
    #allocation3 [shape = 's32[1]{0}', space=sflag, size = 0x4, scoped, tag = 'scoped memory for tpu_custom_call.1']
    #allocation4 [shape = 's32[1]{0}', space=sflag, size = 0x4, scoped, tag = 'scoped memory for tpu_custom_call.1']
    #allocation5 [shape = 'u8[8192]{0}', space=vmem, size = 0x2000, scoped, tag = 'output window, operand 0, single buffered']
    %7 = vsyncpa [#allocation3], 0
    %8 = vsyncpa [#allocation4], 0
    // Predicated region
    $region2: #{tpu_custom_call.1} parent=1 // pred_check
      _
    $region3: #{tpu_custom_call.1} parent=1 // pred_check_branch
      %10 = sbr.rel (0) target = $region5
    $region4: #{tpu_custom_call.1} parent=1 // pred_region
      _
    $region5: #{tpu_custom_call.1} parent=1 // pred_fallthru
      _
    // Predicated region
    $region6: #{tpu_custom_call.1} parent=1 // pred_check
      _
    $region7: #{tpu_custom_call.1} parent=1 // pred_check_branch
      %12 = sbr.rel (0) target = $region9
    $region8: #{tpu_custom_call.1} parent=1 // pred_region
      %s14 = ssub.s32 256, 256
      %15 = vsyncadd [#allocation3], %s14
      %s17 = sshll.u32 [#allocation2], 4
      %s18 = int_to_ptr.vmem [resolvable:$true] %s17
      %20 = dma.hbm_to_vmem [thread:$0]  %s1, 256, %s18, [#allocation3]
    $region9: #{tpu_custom_call.1} parent=1 // pred_fallthru
      _
    // Predicated region
    $region10: #{tpu_custom_call.1} parent=1 // pred_check
      _
    $region11: #{tpu_custom_call.1} parent=1 // pred_check_branch
      %22 = sbr.rel (0) target = $region13
    $region12: #{tpu_custom_call.1} parent=1 // pred_region
      %23 = dma.done [#allocation3], 256
    $region13: #{tpu_custom_call.1} parent=1 // pred_fallthru
      _
    %v24 = vld [vmem:[#allocation2] sm:$0xff]
    %v25 = vld [vmem:[#allocation2 + $0x8] sm:$0xff]
    %v26 = vld [vmem:[%s0] sm:$0xff]
    %28 = vset.pattern.permute.xlu0 0
    %29 = vperm.xlu0 %28, %v26
    %v30 = vpop.permute.xlu0 %29
    %v32 = vmul.f32 %v24, %v30
    %v33 = vmul.f32 %v25, %v30
    %34 = vset.pattern.permute.xlu0 1
    %35 = vperm.xlu0 %34, %v26
    %v36 = vpop.permute.xlu0 %35
    %v38 = vadd.f32 %v32, %v36
    %v39 = vadd.f32 %v33, %v36
    %40 = vst [vmem:[#allocation5] sm:$0xff] %v38
    %41 = vst [vmem:[#allocation5 + $0x8] sm:$0xff] %v39
    // Predicated region
    $region14: #{tpu_custom_call.1} parent=1 // pred_check
      _
    $region15: #{tpu_custom_call.1} parent=1 // pred_check_branch
      %43 = sbr.rel (0) target = $region17
    $region16: #{tpu_custom_call.1} parent=1 // pred_region
      %s45 = ssub.s32 256, 256
      %46 = vsyncadd [#allocation4], %s45
      %s48 = sshll.u32 [#allocation5], 4
      %s49 = int_to_ptr.vmem [resolvable:$true] %s48
      %51 = dma.vmem_to_hbm [thread:$0]  %s49, 256, %s2, [#allocation4]
    $region17: #{tpu_custom_call.1} parent=1 // pred_fallthru
      _
    // Predicated region
    $region18: #{tpu_custom_call.1} parent=1 // pred_check
      _
    $region19: #{tpu_custom_call.1} parent=1 // pred_check_branch
      %53 = sbr.rel (0) target = $region21
    $region20: #{tpu_custom_call.1} parent=1 // pred_region
      %54 = dma.done [#allocation4], 256
    $region21: #{tpu_custom_call.1} parent=1 // pred_fallthru
      _
    %55 = vsyncpa [#allocation3], 1
    %56 = vsyncpa [#allocation4], 1

</llo_original>
